<compile_context>
chip_gen: v6e
topology: v6e:2x2x1
jax: 0.10.0
libtpu: 0.0.40
codegen_flags: <defaults>
</compile_context>

<pallas_src>
import functools
import math
from functools import reduce
from operator import mul

import jax
import jax.numpy as jnp
from jax.experimental import pallas as pl
from jax.experimental.pallas import tpu as pltpu

_LANES = 128
_SUBLANE_PACK = 32        # int8 minimum sublane tile
_TARGET_TILE_R = 2048     # 1 MiB per f32 buffer per tile
_MAX_PAD_FRAC = 0.05      # tolerate <5% grid-rounding padding


def _round_up(x, m):
    return ((x + m - 1) // m) * m


def _padded_layout(n):
    """Return (rows, tile_rows) for a flat population of n elements.

    rows is a multiple of 32 (int8 sublane packing).  tile_rows is a multiple
    of 32 chosen so that (a) rounding rows up to a multiple of tile_rows adds
    <5% padding, and (b) when rows >= 64 the grid has >= 2 steps (v7x 2-TC
    sharding via dimension_semantics=("parallel",)).
    """
    rows = max(1, -(-n // _LANES))              # ceil(n / 128)
    rows = _round_up(rows, _SUBLANE_PACK)

    cap = min(_TARGET_TILE_R, rows)
    if rows >= 2 * _SUBLANE_PACK:               # keep grid >= 2 when possible
        cap = min(cap, (rows // 2) // _SUBLANE_PACK * _SUBLANE_PACK)
    cap = max(cap, _SUBLANE_PACK)

    tile_r = _SUBLANE_PACK
    t = cap
    while t >= _SUBLANE_PACK:                   # largest tile with <5% padding
        padded = _round_up(rows, t)
        if (padded - rows) / rows <= _MAX_PAD_FRAC:
            tile_r = t
            break
        t -= _SUBLANE_PACK

    rows = _round_up(rows, tile_r)
    return rows, tile_r


def _trace_update_kernel(scalars_ref, traces_ref, s_ref, out_ref, *, additive):
    """Elementwise spike-trace update for one (tile_r, 128) tile.

    scalars_ref : SMEM (2,) f32 -> [trace_decay, trace_scale]
    traces_ref  : VMEM (tile_r, 128) f32
    s_ref       : VMEM (tile_r, 128) i8   (0/1 spikes)
    out_ref     : VMEM (tile_r, 128) f32  (aliased with traces input)
    """
    decay = scalars_ref[0]
    decayed = traces_ref[...] * decay
    if additive:
        # traces = traces * decay + trace_scale * s
        out_ref[...] = decayed + scalars_ref[1] * s_ref[...].astype(jnp.float32)
    else:
        # traces.masked_fill_(s, 1)
        out_ref[...] = jnp.where(s_ref[...] != 0, jnp.float32(1.0), decayed)


@functools.partial(jax.jit,
                   static_argnames=("additive", "tile_r"),
                   donate_argnums=(1,))
def _trace_update_padded(scalars, traces2d, s2d, *, additive, tile_r):
    rows = traces2d.shape[0]
    kernel = functools.partial(_trace_update_kernel, additive=additive)
    return pl.pallas_call(
        kernel,
        out_shape=jax.ShapeDtypeStruct((rows, _LANES), jnp.float32),
        grid=(rows // tile_r,),
        in_specs=[
            pl.BlockSpec(memory_space=pltpu.MemorySpace.SMEM),     # [decay, scale]
            pl.BlockSpec((tile_r, _LANES), lambda i: (i, 0)),      # traces
            pl.BlockSpec((tile_r, _LANES), lambda i: (i, 0)),      # spikes (i8)
        ],
        out_specs=pl.BlockSpec((tile_r, _LANES), lambda i: (i, 0)),
        compiler_params=pltpu.CompilerParams(
            dimension_semantics=("parallel",),
            vmem_limit_bytes=32 * 1024 * 1024),
        input_output_aliases={1: 0},                               # traces in-place
    )(scalars, traces2d, s2d)


@functools.partial(jax.jit,
                   static_argnames=("additive",),
                   donate_argnums=(1,))
def _trace_update_fused(scalars, traces2d, s2d, *, additive):
    """Fallback for tiny populations: single fused XLA elementwise op."""
    decayed = traces2d * scalars[0]
    if additive:
        return decayed + scalars[1] * s2d.astype(jnp.float32)
    return jnp.where(s2d != 0, jnp.float32(1.0), decayed)


class NeuralPopulation:
    """JAX/Pallas port of cnsproject NeuralPopulation (base-class forward)."""

    def __init__(self, shape, spike_trace=True, additive_spike_trace=True,
                 tau_s=15.0, trace_scale=1.0, is_inhibitory=False,
                 learning=True, min_pallas_elements=65536):
        self.shape = tuple(shape)
        self.n = reduce(mul, self.shape)
        self.spike_trace = spike_trace
        self.additive_spike_trace = additive_spike_trace
        self._min_pallas_elements = min_pallas_elements

        # persistent padded (rows, 128) state layout
        self._rows, self._tile_r = _padded_layout(self.n)
        self._traces_2d = jnp.zeros((self._rows, _LANES), jnp.float32)
        self._s_2d = jnp.zeros((self._rows, _LANES), jnp.int8)

        if self.spike_trace:
            self._tau_s_py = float(tau_s)
            self.tau_s = jnp.float32(tau_s)
            if self.additive_spike_trace:
                self._trace_scale_py = float(trace_scale)
                self.trace_scale = jnp.float32(trace_scale)
            else:
                self._trace_scale_py = 1.0
                self.trace_scale = jnp.float32(1.0)
            self.trace_decay = jnp.float32(0.0)   # "empty_like(tau_s)"
        self._scalar_key = None                    # cache key: (dt, tau_s, scale)
        self._scalars = None                       # cached (2,) f32 SMEM operand
        self.is_inhibitory = is_inhibitory
        self.learning = learning
        self.dt = None

    # ---- PyTorch-shaped views over the persistent padded layout -----------
    @property
    def traces(self):
        return self._traces_2d.reshape(-1)[: self.n].reshape(self.shape)

    @traces.setter
    def traces(self, value):
        flat = jnp.asarray(value, jnp.float32).reshape(-1)
        pad = self._rows * _LANES - self.n
        self._traces_2d = jnp.pad(flat, (0, pad)).reshape(self._rows, _LANES)

    @property
    def s(self):
        return (self._s_2d.reshape(-1)[: self.n] != 0).reshape(self.shape)

    @s.setter
    def s(self, value):
        # Convenience setter (init / tests). Hot-path spike generation should
        # use set_spikes_padded() to avoid this O(n) repack every step.
        flat = jnp.asarray(value).reshape(-1).astype(jnp.int8)
        pad = self._rows * _LANES - self.n
        self._s_2d = jnp.pad(flat, (0, pad)).reshape(self._rows, _LANES)

    def set_spikes_padded(self, s2d):
        """Direct write of the persistent padded (rows, 128) int8 spike buffer."""
        assert s2d.shape == (self._rows, _LANES) and s2d.dtype == jnp.int8
        self._s_2d = s2d

    # ---- reference-module API ---------------------------------------------
    def compute_decay(self):
        if not self.spike_trace:
            return
        assert self.dt is not None, "set population.dt before calling forward()"
        key = (float(self.dt), self._tau_s_py, self._trace_scale_py)
        if key != self._scalar_key:               # recompute only when dt/tau change
            decay = math.exp(-key[0] / key[1])
            self.trace_decay = jnp.float32(decay)
            self._scalars = jnp.array([decay, key[2]], jnp.float32)
            self._scalar_key = key

    def forward(self, traces_in):
        # Base-class forward ignores the `traces` argument and updates the
        # internal spike-trace state. Hot path is a single jitted dispatch on
        # the persistent padded buffers (in-place via aliasing/donation).
        self.compute_decay()
        if self.spike_trace:
            if self.n >= self._min_pallas_elements:
                self._traces_2d = _trace_update_padded(
                    self._scalars, self._traces_2d, self._s_2d,
                    additive=self.additive_spike_trace, tile_r=self._tile_r)
            else:
                self._traces_2d = _trace_update_fused(
                    self._scalars, self._traces_2d, self._s_2d,
                    additive=self.additive_spike_trace)
        return self.traces

    def reset_state_variables(self):
        self._s_2d = jnp.zeros((self._rows, _LANES), jnp.int8)
        if self.spike_trace:
            self._traces_2d = jnp.zeros((self._rows, _LANES), jnp.float32)

    def train(self, mode=True):
        self.learning = mode
        return self

    # TODO(synk): compute_potential / compute_spike / refractory_and_reset are
    # abstract no-ops in the reference module; nothing to lower.


if __name__ == "__main__":
    key = jax.random.PRNGKey(0)
    k1, k2 = jax.random.split(key)

    pop_shape = (2, 4, 16, 16)          # population topology (batch, C, H, W)
    # min_pallas_elements=0 forces the Pallas path even at this tiny size so
    # the kernel is actually exercised (default would take the fused-jnp path).
    pop = NeuralPopulation(pop_shape, spike_trace=True,
                           additive_spike_trace=True,
                           tau_s=15.0, trace_scale=1.0,
                           min_pallas_elements=0)
    pop.dt = 1.0

    # deterministic example state: existing traces + random spike pattern
    pop.traces = jax.random.uniform(k1, pop_shape, jnp.float32)
    pop.s = jax.random.bernoulli(k2, 0.25, pop_shape)
    traces_before = jnp.array(pop.traces)   # snapshot (traces buffer is donated)
    s_before = jnp.array(pop.s)

    dummy_input = jnp.zeros(pop_shape, jnp.float32)   # ignored, as in base class
    out = pop.forward(dummy_input)
    out = jax.block_until_ready(out)
    decay = jax.block_until_ready(pop.trace_decay)

    # reference check (plain JAX)
    ref_decay = jnp.exp(-jnp.float32(1.0) / jnp.float32(15.0))
    ref = traces_before * ref_decay + 1.0 * s_before.astype(jnp.float32)
    assert out.shape == pop_shape and out.dtype == jnp.float32
    assert jnp.allclose(out, ref, rtol=1e-3, atol=1e-3)
    assert jnp.allclose(decay, ref_decay, rtol=1e-3, atol=1e-3)

    # non-additive path, also through the Pallas kernel
    pop2 = NeuralPopulation(pop_shape, spike_trace=True,
                            additive_spike_trace=False, tau_s=15.0,
                            min_pallas_elements=0)
    pop2.dt = 1.0
    pop2.traces = traces_before
    pop2.s = s_before
    out2 = jax.block_until_ready(pop2.forward(dummy_input))
    ref2 = jnp.where(s_before, 1.0, traces_before * ref_decay)
    assert jnp.allclose(out2, ref2, rtol=1e-3, atol=1e-3)

    # tiny-population fallback path (default threshold -> fused jnp step)
    pop3 = NeuralPopulation(pop_shape, spike_trace=True,
                            additive_spike_trace=True, tau_s=15.0)
    pop3.dt = 1.0
    pop3.traces = traces_before
    pop3.s = s_before
    out3 = jax.block_until_ready(pop3.forward(dummy_input))
    assert jnp.allclose(out3, ref, rtol=1e-3, atol=1e-3)

    print("KERNEL_OK")
</pallas_src>

<mosaic_0001>
module attributes {stable_mosaic.version = 11 : i64} {
  func.func @_trace_update_kernel(%arg0: i32, %arg1: memref<2xf32, #tpu.memory_space<smem>>, %arg2: memref<32x128xf32, #tpu.memory_space<vmem>>, %arg3: memref<32x128xi8, #tpu.memory_space<vmem>>, %arg4: memref<32x128xf32, #tpu.memory_space<vmem>>) attributes {dimension_semantics = [#tpu.dimension_semantics<parallel>], iteration_bounds = array<i64: 1>, scalar_prefetch = 0 : i64, scratch_operands = 0 : i64, tpu.core_type = #tpu.core_type<tc>, window_params = [{transform_indices = @transform_0, window_bounds = array<i64: 2>}, {transform_indices = @transform_1, window_bounds = array<i64: 32, 128>}, {transform_indices = @transform_2, window_bounds = array<i64: 32, 128>}, {transform_indices = @transform_3, window_bounds = array<i64: 32, 128>}]} {
    %c0 = arith.constant 0 : index
    %0 = memref.load %arg1[%c0] : memref<2xf32, #tpu.memory_space<smem>>
    %c0_0 = arith.constant 0 : index
    %c0_1 = arith.constant 0 : index
    %1 = vector.load %arg2[%c0_0, %c0_1] : memref<32x128xf32, #tpu.memory_space<vmem>>, vector<32x128xf32>
    %2 = vector.broadcast %0 : f32 to vector<32x128xf32>
    %3 = arith.mulf %1, %2 : vector<32x128xf32>
    %c1 = arith.constant 1 : index
    %4 = memref.load %arg1[%c1] : memref<2xf32, #tpu.memory_space<smem>>
    %c0_2 = arith.constant 0 : index
    %c0_3 = arith.constant 0 : index
    %5 = vector.load %arg3[%c0_2, %c0_3] : memref<32x128xi8, #tpu.memory_space<vmem>>, vector<32x128xi8>
    %6 = arith.sitofp %5 : vector<32x128xi8> to vector<32x128xf32>
    %7 = vector.broadcast %4 : f32 to vector<32x128xf32>
    %8 = arith.mulf %7, %6 : vector<32x128xf32>
    %9 = arith.addf %3, %8 : vector<32x128xf32>
    %c0_4 = arith.constant 0 : index
    %c0_5 = arith.constant 0 : index
    %10 = vector.load %arg4[%c0_4, %c0_5] : memref<32x128xf32, #tpu.memory_space<vmem>>, vector<32x128xf32>
    tpu.vector_store %arg4[%c0_4, %c0_5], %9 {strides = array<i32>} : memref<32x128xf32, #tpu.memory_space<vmem>>, vector<32x128xf32>,
    return
  }
  func.func @transform_0(%arg0: i32) -> i32 {
    %c0_i32 = arith.constant 0 : i32
    %c0_i32_0 = arith.constant 0 : i32
    return %c0_i32 : i32
  }
  func.func @transform_1(%arg0: i32) -> (i32, i32) {
    %c0_i32 = arith.constant 0 : i32
    %c0_i32_0 = arith.constant 0 : i32
    return %arg0, %c0_i32 : i32, i32
  }
  func.func @transform_2(%arg0: i32) -> (i32, i32) {
    %c0_i32 = arith.constant 0 : i32
    %c0_i32_0 = arith.constant 0 : i32
    return %arg0, %c0_i32 : i32, i32
  }
  func.func @transform_3(%arg0: i32) -> (i32, i32) {
    %c0_i32 = arith.constant 0 : i32
    %c0_i32_0 = arith.constant 0 : i32
    return %arg0, %c0_i32 : i32, i32
  }
}

</mosaic_0001>

<llo_original>
// kernel: _trace_update_padded.1
$region0: #{_trace_update_padded.1}
  #allocation0 [shape = 'u32[]', space=smem, size = 0x4, offset = 0x4, fixed_abs, tag = 'smem constant byte address 0x4 - core index']
  #allocation1 [shape = 'u32[144,128]{1,0:T(1,128)}', space=vmem, size = 0x12000, scoped, tag = 'internal scratch']
  %s0 = inlined_call_operand.hbm [shape: f32[2], index: 0, kind: input, shape index: {}]
  %s1 = inlined_call_operand.hbm [shape: f32[32,128], index: 1, kind: input, shape index: {}, may-alias: {1,3}]
  %s2 = inlined_call_operand.hbm [shape: s8[32,128], index: 2, kind: input, shape index: {}]
  %s3 = inlined_call_operand.hbm [shape: f32[32,128], index: 3, kind: output, shape index: {}, may-alias: {1,3}]
  %s4 = sld [smem:[#allocation0]]
  $region34: #{_trace_update_padded.1} parent=0
    _
  %s6 = ssub.s32 1, %s4
  %s7 = scalar_select 0, %s6, %s4
  $region1: #{_trace_update_padded.1} parent=0
    #allocation2 [shape = 'u8[512]{0}', space=smem, size = 0x200, scoped, tag = 'input window, operand 0, single buffered']
    #allocation3 [shape = 's32[1]{0}', space=sflag, size = 0x4, scoped, tag = 'scoped memory for _trace_update_padded.1']
    #allocation4 [shape = 's32[1]{0}', space=sflag, size = 0x4, scoped, tag = 'scoped memory for _trace_update_padded.1']
    #allocation5 [shape = 's32[1]{0}', space=sflag, size = 0x4, scoped, tag = 'scoped memory for _trace_update_padded.1']
    #allocation6 [shape = 'u8[16384]{0}', space=vmem, size = 0x4000, scoped, tag = 'input window, operand 1, single buffered']
    #allocation7 [shape = 'u8[4096]{0}', space=vmem, size = 0x1000, scoped, tag = 'input window, operand 2, single buffered']
    #allocation8 [shape = 's32[1]{0}', space=sflag, size = 0x4, scoped, tag = 'scoped memory for _trace_update_padded.1']
    #allocation9 [shape = 'u8[16384]{0}', space=vmem, size = 0x4000, scoped, tag = 'output window, operand 0, single buffered']
    %8 = vsyncpa [#allocation5], 0
    %9 = vsyncpa [#allocation3], 0
    %10 = vsyncpa [#allocation8], 0
    %11 = vsyncpa [#allocation4], 0
    // Predicated region
    $region2: #{_trace_update_padded.1} parent=1 // pred_check
      _
    $region3: #{_trace_update_padded.1} parent=1 // pred_check_branch
      %13 = sbr.rel (0) target = $region5
    $region4: #{_trace_update_padded.1} parent=1 // pred_region
      %s15 = ssub.s32 16, 16
      %16 = vsyncadd [#allocation5], %s15
      %19 = dma.hbm_to_smem %s0, 16, [#allocation2], [#allocation5]
    $region5: #{_trace_update_padded.1} parent=1 // pred_fallthru
      _
    // Predicated region
    $region6: #{_trace_update_padded.1} parent=1 // pred_check
      _
    $region7: #{_trace_update_padded.1} parent=1 // pred_check_branch
      %21 = sbr.rel (0) target = $region9
    $region8: #{_trace_update_padded.1} parent=1 // pred_region
      %s23 = ssub.s32 512, 512
      %24 = vsyncadd [#allocation3], %s23
      %s25 = sshll.u32 [#allocation6], 4
      %s26 = int_to_ptr.vmem [resolvable:$true] %s25
      %31 = dma.hbm_to_vmem [thread:$0]  %s1, 512, %s26, [#allocation3], 128, 128, 8
    $region9: #{_trace_update_padded.1} parent=1 // pred_fallthru
      _
    // Predicated region
    $region10: #{_trace_update_padded.1} parent=1 // pred_check
      _
    $region11: #{_trace_update_padded.1} parent=1 // pred_check_branch
      %33 = sbr.rel (0) target = $region13
    $region12: #{_trace_update_padded.1} parent=1 // pred_region
      %s35 = ssub.s32 128, 128
      %36 = vsyncadd [#allocation8], %s35
      %s38 = sshll.u32 [#allocation7], 4
      %s39 = int_to_ptr.vmem [resolvable:$true] %s38
      %41 = dma.hbm_to_vmem [thread:$0]  %s2, 128, %s39, [#allocation8]
    $region13: #{_trace_update_padded.1} parent=1 // pred_fallthru
      _
    // Predicated region
    $region14: #{_trace_update_padded.1} parent=1 // pred_check
      _
    $region15: #{_trace_update_padded.1} parent=1 // pred_check_branch
      %43 = sbr.rel (0) target = $region17
    $region16: #{_trace_update_padded.1} parent=1 // pred_region
      %44 = dma.done [#allocation5], 16
    $region17: #{_trace_update_padded.1} parent=1 // pred_fallthru
      _
    // Predicated region
    $region18: #{_trace_update_padded.1} parent=1 // pred_check
      _
    $region19: #{_trace_update_padded.1} parent=1 // pred_check_branch
      %46 = sbr.rel (0) target = $region21
    $region20: #{_trace_update_padded.1} parent=1 // pred_region
      %47 = dma.done [#allocation3], 512
    $region21: #{_trace_update_padded.1} parent=1 // pred_fallthru
      _
    // Predicated region
    $region22: #{_trace_update_padded.1} parent=1 // pred_check
      _
    $region23: #{_trace_update_padded.1} parent=1 // pred_check_branch
      %49 = sbr.rel (0) target = $region25
    $region24: #{_trace_update_padded.1} parent=1 // pred_region
      %50 = dma.done [#allocation8], 128
    $region25: #{_trace_update_padded.1} parent=1 // pred_fallthru
      _
    %51 = sfence
    %s52 = sld [smem:[#allocation2]]
    %v53 = vld [vmem:[#allocation6] sm:$0xff]
    %v54 = vld [vmem:[#allocation6 + $0x8] sm:$0xff]
    %v55 = vld [vmem:[#allocation6 + $0x10] sm:$0xff]
    %v56 = vld [vmem:[#allocation6 + $0x18] sm:$0xff]
    %v57 = vstv %s52
    %v58 = vmul.f32 %v53, %v57
    %v59 = vmul.f32 %v54, %v57
    %v60 = vmul.f32 %v55, %v57
    %v61 = vmul.f32 %v56, %v57
    %s62 = sld [smem:[#allocation2 + $0x1]]
    %v63 = vld [vmem:[#allocation7] sm:$0xff]
    %v64 = vunpack.c.0.s8 %v63
    %v65 = vunpack.c.1.s8 %v63
    %v66 = vunpack.c.2.s8 %v63
    %v67 = vunpack.c.3.s8 %v63
    %v68 = vcvt.s32.f32 %v64
    %v69 = vcvt.s32.f32 %v65
    %v70 = vcvt.s32.f32 %v66
    %v71 = vcvt.s32.f32 %v67
    %v72 = vstv %s62
    %v73 = vmul.f32 %v72, %v68
    %v74 = vmul.f32 %v72, %v69
    %v75 = vmul.f32 %v72, %v70
    %v76 = vmul.f32 %v72, %v71
    %v77 = vadd.f32 %v58, %v73
    %v78 = vadd.f32 %v59, %v74
    %v79 = vadd.f32 %v60, %v75
    %v80 = vadd.f32 %v61, %v76
    %81 = vst [vmem:[#allocation9] sm:$0xff] %v77
    %82 = vst [vmem:[#allocation9 + $0x8] sm:$0xff] %v78
    %83 = vst [vmem:[#allocation9 + $0x10] sm:$0xff] %v79
    %84 = vst [vmem:[#allocation9 + $0x18] sm:$0xff] %v80
    // Predicated region
    $region26: #{_trace_update_padded.1} parent=1 // pred_check
      _
    $region27: #{_trace_update_padded.1} parent=1 // pred_check_branch
      %86 = sbr.rel (0) target = $region29
    $region28: #{_trace_update_padded.1} parent=1 // pred_region
      %s88 = ssub.s32 512, 512
      %89 = vsyncadd [#allocation4], %s88
      %s90 = sshll.u32 [#allocation9], 4
      %s91 = int_to_ptr.vmem [resolvable:$true] %s90
      %96 = dma.vmem_to_hbm [thread:$0]  %s91, 512, %s3, [#allocation4], 128, 128, 8
    $region29: #{_trace_update_padded.1} parent=1 // pred_fallthru
      _
    // Predicated region
    $region30: #{_trace_update_padded.1} parent=1 // pred_check
      _
    $region31: #{_trace_update_padded.1} parent=1 // pred_check_branch
      %98 = sbr.rel (0) target = $region33
    $region32: #{_trace_update_padded.1} parent=1 // pred_region
      %99 = dma.done [#allocation4], 512
    $region33: #{_trace_update_padded.1} parent=1 // pred_fallthru
      _
    %100 = vsyncpa [#allocation3], 1
    %101 = vsyncpa [#allocation8], 1
    %102 = vsyncpa [#allocation4], 1
    %103 = vsyncpa [#allocation5], 1

</llo_original>
